<compile_context>
chip_gen: v6e
topology: v6e:2x2x1
jax: 0.10.0
libtpu: 0.0.40
codegen_flags: <defaults>
</compile_context>

<pallas_src>
import functools
import math

import jax
import jax.numpy as jnp
from jax import lax
from jax.experimental import pallas as pl
from jax.experimental.pallas import tpu as pltpu


def _tpu_tuning():
    """Return (nsplit, target_tile_bytes, vmem_limit_bytes) for this TPU generation."""
    try:
        kind = jax.devices()[0].device_kind.lower()
    except Exception:
        kind = ""
    if "7" in kind:                       # v7x: 2 TensorCores, 64 MiB VMEM per TC
        return 2, 10 << 20, 50 << 20
    if any(v in kind for v in ("v2", "v3", "v4", "v5", "v6")):
        return 1, 16 << 20, 96 << 20      # single TC, 128 MiB VMEM
    return 1, 8 << 20, 48 << 20           # unknown backend: conservative


def _lane_dense_shape(H, W, itemsize):
    """Pick g | H so a slice (H, W) -> (R, C) = (H//g, g*W) minimizes padded VMEM."""
    sub = 8 * max(1, 4 // itemsize)       # sublane padding (sub-32-bit dtypes pack)
    best = None
    for g in range(1, H + 1):
        if H % g:
            continue
        r, c = H // g, g * W
        padded = (-(-r // sub) * sub) * (-(-c // 128) * 128) * itemsize
        key = (padded, -c)                # min padded bytes, tie-break: max lane width
        if best is None or key < best[0]:
            best = (key, g, r, c, padded)
    _, g, r, c, padded = best
    return g, r, c, padded


def _mse_weight_kernel(x_ref, y_ref, w_ref, out_ref, acc_ref, *, steps, tb, bc):
    c = pl.program_id(0)
    i = pl.program_id(1)

    @pl.when(i == 0)
    def _init():
        acc_ref[...] = jnp.zeros_like(acc_ref)

    base = (c * steps + i) * tb           # global slice index of slab 0 in this block

    def body(k, carry):
        # One (R, C) slab at a time: no (tb, R, C) f32 intermediate, 3 vld / 4 VALU /
        # 1 vst per vreg, fully hidden under the input DMA.
        d = x_ref[k].astype(jnp.float32) - y_ref[k].astype(jnp.float32)
        # Mask slabs past the true B*C extent (last / clamped block may hold garbage).
        acc_ref[...] += jnp.where(base + k < bc, d * d, 0.0)
        return carry

    lax.fori_loop(0, tb, body, 0, unroll=min(8, tb))

    @pl.when(i == steps - 1)
    def _finalize():
        partial = jnp.sum(acc_ref[...] * w_ref[...])   # single weighted reduce / chunk
        out_ref[...] = jnp.full(out_ref.shape, partial, jnp.float32)


def mse_weight_loss(x, y):
    """x, y: (B, C, H, W). Returns scalar float32 loss (matches PyTorch module)."""
    assert x.shape == y.shape
    B, Ch, H, W = y.shape
    BC = B * Ch
    itemsize = jnp.dtype(x.dtype).itemsize

    nsplit, target_tile, vmem_limit = _tpu_tuning()
    nsplit = min(nsplit, BC)

    g, R, C, slab_pad = _lane_dense_shape(H, W, itemsize)

    # Per-input-buffer budget: 2 inputs x 2 pipeline buffers + resident weight (x2 buf)
    # + (R, C) f32 accumulator + small output.
    # TODO(synk): a single slice too large for VMEM (slab_pad approaching vmem_limit/4)
    # would need intra-slice tiling; not implemented here.
    resident = 3 * slab_pad + nsplit * 8 * 128 * 4 + (1 << 20)
    per_buf = max(slab_pad, (vmem_limit - resident) // 4)
    tile_bytes = max(slab_pad, min(target_tile, per_buf))

    slices_per_chunk = pl.cdiv(BC, nsplit)
    tb = max(1, min(tile_bytes // slab_pad, slices_per_chunk))
    steps = pl.cdiv(slices_per_chunk, tb)
    nblocks = pl.cdiv(BC, tb)

    # Free reshapes (contiguous dims): no HBM copy, unlike the old jnp.pad path.
    xf = x.reshape(BC, R, C)
    yf = y.reshape(BC, R, C)

    # Latitude weights: only an (R, C)-shaped map (H*W*4 bytes, resident in VMEM) plus
    # the scalar denominator; equ is never built at full (B, C, H, W) broadcast size.
    j = jnp.arange(H, dtype=jnp.float32)
    row_w = jnp.cos((j - H / 2.0 + 0.5) * (math.pi / H))
    w_map = jnp.broadcast_to(row_w[:, None], (H, W)).reshape(R, C)
    denom = jnp.float32(W) * jnp.sum(row_w)            # == sum(equ)

    def data_map(c, i):
        # Chunks other than the last may step past the last valid block; those steps are
        # fully masked in the kernel, so clamping (re-reading the last block) is harmless.
        return (jnp.minimum(c * steps + i, nblocks - 1), 0, 0)

    kernel = functools.partial(_mse_weight_kernel, steps=steps, tb=tb, bc=BC)

    partials = pl.pallas_call(
        kernel,
        out_shape=jax.ShapeDtypeStruct((nsplit, 8, 128), jnp.float32),
        grid_spec=pltpu.PrefetchScalarGridSpec(
            num_scalar_prefetch=0,
            grid=(nsplit, steps),
            in_specs=[
                pl.BlockSpec((tb, R, C), data_map),
                pl.BlockSpec((tb, R, C), data_map),
                pl.BlockSpec((R, C), lambda c, i: (0, 0)),   # resident weight map
            ],
            out_specs=pl.BlockSpec((1, 8, 128), lambda c, i: (c, 0, 0)),
            scratch_shapes=[pltpu.VMEM((R, C), jnp.float32)],
        ),
        # TODO(synk): on v7x, verify the leading "parallel" axis actually shards across
        # both TensorCores (otherwise switch it to pltpu.CORE_PARALLEL / a core_map split).
        compiler_params=pltpu.CompilerParams(
            dimension_semantics=("parallel", "arbitrary"),
            vmem_limit_bytes=vmem_limit,
        ),
    )(xf, yf, w_map)

    return jnp.sum(partials[:, 0, 0]) / denom


def _reference(x, y):
    B, Ch, H, W = y.shape
    j = jnp.arange(H, dtype=jnp.float32)
    row_w = jnp.cos((j - H / 2.0 + 0.5) * (math.pi / H))
    equ = jnp.broadcast_to(row_w[:, None], (H, W))
    diff = x.astype(jnp.float32) - y.astype(jnp.float32)
    return jnp.sum(diff * diff * equ) / jnp.sum(equ)


if __name__ == "__main__":
    key = jax.random.PRNGKey(0)
    kx, ky = jax.random.split(key)
    B, Ch, H, W = 2, 4, 16, 16
    x = jax.random.normal(kx, (B, Ch, H, W), dtype=jnp.float32)
    y = jax.random.normal(ky, (B, Ch, H, W), dtype=jnp.float32)

    loss = jax.block_until_ready(mse_weight_loss(x, y))
    ref = jax.block_until_ready(_reference(x, y))

    assert jnp.allclose(loss, ref, rtol=1e-5, atol=1e-5), (loss, ref)
    print("KERNEL_OK")
</pallas_src>

<mosaic_0001>
module attributes {stable_mosaic.version = 11 : i64} {
  func.func @_mse_weight_kernel(%arg0: i32, %arg1: i32, %arg2: memref<8x2x128xf32, #tpu.memory_space<vmem>>, %arg3: memref<8x2x128xf32, #tpu.memory_space<vmem>>, %arg4: memref<2x128xf32, #tpu.memory_space<vmem>>, %arg5: memref<1x8x128xf32, #tpu.memory_space<vmem>>, %arg6: memref<2x128xf32, #tpu.memory_space<vmem>>) attributes {dimension_semantics = [#tpu.dimension_semantics<parallel>, #tpu.dimension_semantics<arbitrary>], iteration_bounds = array<i64: 1, 1>, scalar_prefetch = 0 : i64, scratch_operands = 1 : i64, tpu.core_type = #tpu.core_type<tc>, window_params = [{transform_indices = @transform_0, window_bounds = array<i64: 8, 2, 128>}, {transform_indices = @transform_1, window_bounds = array<i64: 8, 2, 128>}, {pipeline_mode = #tpu.pipeline_mode<synchronous>, transform_indices = @transform_2, window_bounds = array<i64: 2, 128>}, {transform_indices = @transform_3, window_bounds = array<i64: 1, 8, 128>}]} {
    %c0_i32 = arith.constant 0 : i32
    %0 = arith.cmpi eq, %arg1, %c0_i32 : i32
    %1 = arith.extui %0 : i1 to i32
    %c0_i32_0 = arith.constant 0 : i32
    %2 = arith.cmpi ne, %1, %c0_i32_0 : i32
    scf.if %2 {
      %cst_84 = arith.constant 0.000000e+00 : f32
      %129 = vector.broadcast %cst_84 : f32 to vector<2x128xf32>
      %c0_85 = arith.constant 0 : index
      %c0_86 = arith.constant 0 : index
      %130 = vector.load %arg6[%c0_85, %c0_86] : memref<2x128xf32, #tpu.memory_space<vmem>>, vector<2x128xf32>
      tpu.vector_store %arg6[%c0_85, %c0_86], %129 {strides = array<i32>} : memref<2x128xf32, #tpu.memory_space<vmem>>, vector<2x128xf32>,
    } else {
    }
    %c1_i32 = arith.constant 1 : i32
    %3 = arith.muli %arg0, %c1_i32 : i32
    %4 = arith.addi %3, %arg1 : i32
    %c8_i32 = arith.constant 8 : i32
    %5 = arith.muli %4, %c8_i32 : i32
    %c0_i32_1 = arith.constant 0 : i32
    %6 = arith.index_cast %c0_i32_1 : i32 to index
    %c0 = arith.constant 0 : index
    %c0_2 = arith.constant 0 : index
    %7 = vector.load %arg2[%6, %c0, %c0_2] : memref<8x2x128xf32, #tpu.memory_space<vmem>>, vector<1x2x128xf32>
    %8 = vector.shape_cast %7 : vector<1x2x128xf32> to vector<2x128xf32>
    %9 = arith.index_cast %c0_i32_1 : i32 to index
    %c0_3 = arith.constant 0 : index
    %c0_4 = arith.constant 0 : index
    %10 = vector.load %arg3[%9, %c0_3, %c0_4] : memref<8x2x128xf32, #tpu.memory_space<vmem>>, vector<1x2x128xf32>
    %11 = vector.shape_cast %10 : vector<1x2x128xf32> to vector<2x128xf32>
    %12 = arith.subf %8, %11 : vector<2x128xf32>
    %c0_5 = arith.constant 0 : index
    %c0_6 = arith.constant 0 : index
    %13 = vector.load %arg6[%c0_5, %c0_6] : memref<2x128xf32, #tpu.memory_space<vmem>>, vector<2x128xf32>
    %14 = arith.addi %5, %c0_i32_1 : i32
    %c8_i32_7 = arith.constant 8 : i32
    %15 = arith.cmpi slt, %14, %c8_i32_7 : i32
    %16 = arith.mulf %12, %12 : vector<2x128xf32>
    %cst = arith.constant 0.000000e+00 : f32
    %17 = vector.broadcast %cst : f32 to vector<2x128xf32>
    %18 = arith.select %15, %16, %17 : vector<2x128xf32>
    %19 = arith.addf %13, %18 : vector<2x128xf32>
    %c0_8 = arith.constant 0 : index
    %c0_9 = arith.constant 0 : index
    %20 = vector.load %arg6[%c0_8, %c0_9] : memref<2x128xf32, #tpu.memory_space<vmem>>, vector<2x128xf32>
    tpu.vector_store %arg6[%c0_8, %c0_9], %19 {strides = array<i32>} : memref<2x128xf32, #tpu.memory_space<vmem>>, vector<2x128xf32>,
    %c1_i32_10 = arith.constant 1 : i32
    %21 = arith.index_cast %c1_i32_10 : i32 to index
    %c0_11 = arith.constant 0 : index
    %c0_12 = arith.constant 0 : index
    %22 = vector.load %arg2[%21, %c0_11, %c0_12] : memref<8x2x128xf32, #tpu.memory_space<vmem>>, vector<1x2x128xf32>
    %23 = vector.shape_cast %22 : vector<1x2x128xf32> to vector<2x128xf32>
    %24 = arith.index_cast %c1_i32_10 : i32 to index
    %c0_13 = arith.constant 0 : index
    %c0_14 = arith.constant 0 : index
    %25 = vector.load %arg3[%24, %c0_13, %c0_14] : memref<8x2x128xf32, #tpu.memory_space<vmem>>, vector<1x2x128xf32>
    %26 = vector.shape_cast %25 : vector<1x2x128xf32> to vector<2x128xf32>
    %27 = arith.subf %23, %26 : vector<2x128xf32>
    %c0_15 = arith.constant 0 : index
    %c0_16 = arith.constant 0 : index
    %28 = vector.load %arg6[%c0_15, %c0_16] : memref<2x128xf32, #tpu.memory_space<vmem>>, vector<2x128xf32>
    %29 = arith.addi %5, %c1_i32_10 : i32
    %c8_i32_17 = arith.constant 8 : i32
    %30 = arith.cmpi slt, %29, %c8_i32_17 : i32
    %31 = arith.mulf %27, %27 : vector<2x128xf32>
    %cst_18 = arith.constant 0.000000e+00 : f32
    %32 = vector.broadcast %cst_18 : f32 to vector<2x128xf32>
    %33 = arith.select %30, %31, %32 : vector<2x128xf32>
    %34 = arith.addf %28, %33 : vector<2x128xf32>
    %c0_19 = arith.constant 0 : index
    %c0_20 = arith.constant 0 : index
    %35 = vector.load %arg6[%c0_19, %c0_20] : memref<2x128xf32, #tpu.memory_space<vmem>>, vector<2x128xf32>
    tpu.vector_store %arg6[%c0_19, %c0_20], %34 {strides = array<i32>} : memref<2x128xf32, #tpu.memory_space<vmem>>, vector<2x128xf32>,
    %c2_i32 = arith.constant 2 : i32
    %36 = arith.index_cast %c2_i32 : i32 to index
    %c0_21 = arith.constant 0 : index
    %c0_22 = arith.constant 0 : index
    %37 = vector.load %arg2[%36, %c0_21, %c0_22] : memref<8x2x128xf32, #tpu.memory_space<vmem>>, vector<1x2x128xf32>
    %38 = vector.shape_cast %37 : vector<1x2x128xf32> to vector<2x128xf32>
    %39 = arith.index_cast %c2_i32 : i32 to index
    %c0_23 = arith.constant 0 : index
    %c0_24 = arith.constant 0 : index
    %40 = vector.load %arg3[%39, %c0_23, %c0_24] : memref<8x2x128xf32, #tpu.memory_space<vmem>>, vector<1x2x128xf32>
    %41 = vector.shape_cast %40 : vector<1x2x128xf32> to vector<2x128xf32>
    %42 = arith.subf %38, %41 : vector<2x128xf32>
    %c0_25 = arith.constant 0 : index
    %c0_26 = arith.constant 0 : index
    %43 = vector.load %arg6[%c0_25, %c0_26] : memref<2x128xf32, #tpu.memory_space<vmem>>, vector<2x128xf32>
    %44 = arith.addi %5, %c2_i32 : i32
    %c8_i32_27 = arith.constant 8 : i32
    %45 = arith.cmpi slt, %44, %c8_i32_27 : i32
    %46 = arith.mulf %42, %42 : vector<2x128xf32>
    %cst_28 = arith.constant 0.000000e+00 : f32
    %47 = vector.broadcast %cst_28 : f32 to vector<2x128xf32>
    %48 = arith.select %45, %46, %47 : vector<2x128xf32>
    %49 = arith.addf %43, %48 : vector<2x128xf32>
    %c0_29 = arith.constant 0 : index
    %c0_30 = arith.constant 0 : index
    %50 = vector.load %arg6[%c0_29, %c0_30] : memref<2x128xf32, #tpu.memory_space<vmem>>, vector<2x128xf32>
    tpu.vector_store %arg6[%c0_29, %c0_30], %49 {strides = array<i32>} : memref<2x128xf32, #tpu.memory_space<vmem>>, vector<2x128xf32>,
    %c3_i32 = arith.constant 3 : i32
    %51 = arith.index_cast %c3_i32 : i32 to index
    %c0_31 = arith.constant 0 : index
    %c0_32 = arith.constant 0 : index
    %52 = vector.load %arg2[%51, %c0_31, %c0_32] : memref<8x2x128xf32, #tpu.memory_space<vmem>>, vector<1x2x128xf32>
    %53 = vector.shape_cast %52 : vector<1x2x128xf32> to vector<2x128xf32>
    %54 = arith.index_cast %c3_i32 : i32 to index
    %c0_33 = arith.constant 0 : index
    %c0_34 = arith.constant 0 : index
    %55 = vector.load %arg3[%54, %c0_33, %c0_34] : memref<8x2x128xf32, #tpu.memory_space<vmem>>, vector<1x2x128xf32>
    %56 = vector.shape_cast %55 : vector<1x2x128xf32> to vector<2x128xf32>
    %57 = arith.subf %53, %56 : vector<2x128xf32>
    %c0_35 = arith.constant 0 : index
    %c0_36 = arith.constant 0 : index
    %58 = vector.load %arg6[%c0_35, %c0_36] : memref<2x128xf32, #tpu.memory_space<vmem>>, vector<2x128xf32>
    %59 = arith.addi %5, %c3_i32 : i32
    %c8_i32_37 = arith.constant 8 : i32
    %60 = arith.cmpi slt, %59, %c8_i32_37 : i32
    %61 = arith.mulf %57, %57 : vector<2x128xf32>
    %cst_38 = arith.constant 0.000000e+00 : f32
    %62 = vector.broadcast %cst_38 : f32 to vector<2x128xf32>
    %63 = arith.select %60, %61, %62 : vector<2x128xf32>
    %64 = arith.addf %58, %63 : vector<2x128xf32>
    %c0_39 = arith.constant 0 : index
    %c0_40 = arith.constant 0 : index
    %65 = vector.load %arg6[%c0_39, %c0_40] : memref<2x128xf32, #tpu.memory_space<vmem>>, vector<2x128xf32>
    tpu.vector_store %arg6[%c0_39, %c0_40], %64 {strides = array<i32>} : memref<2x128xf32, #tpu.memory_space<vmem>>, vector<2x128xf32>,
    %c4_i32 = arith.constant 4 : i32
    %66 = arith.index_cast %c4_i32 : i32 to index
    %c0_41 = arith.constant 0 : index
    %c0_42 = arith.constant 0 : index
    %67 = vector.load %arg2[%66, %c0_41, %c0_42] : memref<8x2x128xf32, #tpu.memory_space<vmem>>, vector<1x2x128xf32>
    %68 = vector.shape_cast %67 : vector<1x2x128xf32> to vector<2x128xf32>
    %69 = arith.index_cast %c4_i32 : i32 to index
    %c0_43 = arith.constant 0 : index
    %c0_44 = arith.constant 0 : index
    %70 = vector.load %arg3[%69, %c0_43, %c0_44] : memref<8x2x128xf32, #tpu.memory_space<vmem>>, vector<1x2x128xf32>
    %71 = vector.shape_cast %70 : vector<1x2x128xf32> to vector<2x128xf32>
    %72 = arith.subf %68, %71 : vector<2x128xf32>
    %c0_45 = arith.constant 0 : index
    %c0_46 = arith.constant 0 : index
    %73 = vector.load %arg6[%c0_45, %c0_46] : memref<2x128xf32, #tpu.memory_space<vmem>>, vector<2x128xf32>
    %74 = arith.addi %5, %c4_i32 : i32
    %c8_i32_47 = arith.constant 8 : i32
    %75 = arith.cmpi slt, %74, %c8_i32_47 : i32
    %76 = arith.mulf %72, %72 : vector<2x128xf32>
    %cst_48 = arith.constant 0.000000e+00 : f32
    %77 = vector.broadcast %cst_48 : f32 to vector<2x128xf32>
    %78 = arith.select %75, %76, %77 : vector<2x128xf32>
    %79 = arith.addf %73, %78 : vector<2x128xf32>
    %c0_49 = arith.constant 0 : index
    %c0_50 = arith.constant 0 : index
    %80 = vector.load %arg6[%c0_49, %c0_50] : memref<2x128xf32, #tpu.memory_space<vmem>>, vector<2x128xf32>
    tpu.vector_store %arg6[%c0_49, %c0_50], %79 {strides = array<i32>} : memref<2x128xf32, #tpu.memory_space<vmem>>, vector<2x128xf32>,
    %c5_i32 = arith.constant 5 : i32
    %81 = arith.index_cast %c5_i32 : i32 to index
    %c0_51 = arith.constant 0 : index
    %c0_52 = arith.constant 0 : index
    %82 = vector.load %arg2[%81, %c0_51, %c0_52] : memref<8x2x128xf32, #tpu.memory_space<vmem>>, vector<1x2x128xf32>
    %83 = vector.shape_cast %82 : vector<1x2x128xf32> to vector<2x128xf32>
    %84 = arith.index_cast %c5_i32 : i32 to index
    %c0_53 = arith.constant 0 : index
    %c0_54 = arith.constant 0 : index
    %85 = vector.load %arg3[%84, %c0_53, %c0_54] : memref<8x2x128xf32, #tpu.memory_space<vmem>>, vector<1x2x128xf32>
    %86 = vector.shape_cast %85 : vector<1x2x128xf32> to vector<2x128xf32>
    %87 = arith.subf %83, %86 : vector<2x128xf32>
    %c0_55 = arith.constant 0 : index
    %c0_56 = arith.constant 0 : index
    %88 = vector.load %arg6[%c0_55, %c0_56] : memref<2x128xf32, #tpu.memory_space<vmem>>, vector<2x128xf32>
    %89 = arith.addi %5, %c5_i32 : i32
    %c8_i32_57 = arith.constant 8 : i32
    %90 = arith.cmpi slt, %89, %c8_i32_57 : i32
    %91 = arith.mulf %87, %87 : vector<2x128xf32>
    %cst_58 = arith.constant 0.000000e+00 : f32
    %92 = vector.broadcast %cst_58 : f32 to vector<2x128xf32>
    %93 = arith.select %90, %91, %92 : vector<2x128xf32>
    %94 = arith.addf %88, %93 : vector<2x128xf32>
    %c0_59 = arith.constant 0 : index
    %c0_60 = arith.constant 0 : index
    %95 = vector.load %arg6[%c0_59, %c0_60] : memref<2x128xf32, #tpu.memory_space<vmem>>, vector<2x128xf32>
    tpu.vector_store %arg6[%c0_59, %c0_60], %94 {strides = array<i32>} : memref<2x128xf32, #tpu.memory_space<vmem>>, vector<2x128xf32>,
    %c6_i32 = arith.constant 6 : i32
    %96 = arith.index_cast %c6_i32 : i32 to index
    %c0_61 = arith.constant 0 : index
    %c0_62 = arith.constant 0 : index
    %97 = vector.load %arg2[%96, %c0_61, %c0_62] : memref<8x2x128xf32, #tpu.memory_space<vmem>>, vector<1x2x128xf32>
    %98 = vector.shape_cast %97 : vector<1x2x128xf32> to vector<2x128xf32>
    %99 = arith.index_cast %c6_i32 : i32 to index
    %c0_63 = arith.constant 0 : index
    %c0_64 = arith.constant 0 : index
    %100 = vector.load %arg3[%99, %c0_63, %c0_64] : memref<8x2x128xf32, #tpu.memory_space<vmem>>, vector<1x2x128xf32>
    %101 = vector.shape_cast %100 : vector<1x2x128xf32> to vector<2x128xf32>
    %102 = arith.subf %98, %101 : vector<2x128xf32>
    %c0_65 = arith.constant 0 : index
    %c0_66 = arith.constant 0 : index
    %103 = vector.load %arg6[%c0_65, %c0_66] : memref<2x128xf32, #tpu.memory_space<vmem>>, vector<2x128xf32>
    %104 = arith.addi %5, %c6_i32 : i32
    %c8_i32_67 = arith.constant 8 : i32
    %105 = arith.cmpi slt, %104, %c8_i32_67 : i32
    %106 = arith.mulf %102, %102 : vector<2x128xf32>
    %cst_68 = arith.constant 0.000000e+00 : f32
    %107 = vector.broadcast %cst_68 : f32 to vector<2x128xf32>
    %108 = arith.select %105, %106, %107 : vector<2x128xf32>
    %109 = arith.addf %103, %108 : vector<2x128xf32>
    %c0_69 = arith.constant 0 : index
    %c0_70 = arith.constant 0 : index
    %110 = vector.load %arg6[%c0_69, %c0_70] : memref<2x128xf32, #tpu.memory_space<vmem>>, vector<2x128xf32>
    tpu.vector_store %arg6[%c0_69, %c0_70], %109 {strides = array<i32>} : memref<2x128xf32, #tpu.memory_space<vmem>>, vector<2x128xf32>,
    %c7_i32 = arith.constant 7 : i32
    %111 = arith.index_cast %c7_i32 : i32 to index
    %c0_71 = arith.constant 0 : index
    %c0_72 = arith.constant 0 : index
    %112 = vector.load %arg2[%111, %c0_71, %c0_72] : memref<8x2x128xf32, #tpu.memory_space<vmem>>, vector<1x2x128xf32>
    %113 = vector.shape_cast %112 : vector<1x2x128xf32> to vector<2x128xf32>
    %114 = arith.index_cast %c7_i32 : i32 to index
    %c0_73 = arith.constant 0 : index
    %c0_74 = arith.constant 0 : index
    %115 = vector.load %arg3[%114, %c0_73, %c0_74] : memref<8x2x128xf32, #tpu.memory_space<vmem>>, vector<1x2x128xf32>
    %116 = vector.shape_cast %115 : vector<1x2x128xf32> to vector<2x128xf32>
    %117 = arith.subf %113, %116 : vector<2x128xf32>
    %c0_75 = arith.constant 0 : index
    %c0_76 = arith.constant 0 : index
    %118 = vector.load %arg6[%c0_75, %c0_76] : memref<2x128xf32, #tpu.memory_space<vmem>>, vector<2x128xf32>
    %119 = arith.addi %5, %c7_i32 : i32
    %c8_i32_77 = arith.constant 8 : i32
    %120 = arith.cmpi slt, %119, %c8_i32_77 : i32
    %121 = arith.mulf %117, %117 : vector<2x128xf32>
    %cst_78 = arith.constant 0.000000e+00 : f32
    %122 = vector.broadcast %cst_78 : f32 to vector<2x128xf32>
    %123 = arith.select %120, %121, %122 : vector<2x128xf32>
    %124 = arith.addf %118, %123 : vector<2x128xf32>
    %c0_79 = arith.constant 0 : index
    %c0_80 = arith.constant 0 : index
    %125 = vector.load %arg6[%c0_79, %c0_80] : memref<2x128xf32, #tpu.memory_space<vmem>>, vector<2x128xf32>
    tpu.vector_store %arg6[%c0_79, %c0_80], %124 {strides = array<i32>} : memref<2x128xf32, #tpu.memory_space<vmem>>, vector<2x128xf32>,
    %c8_i32_81 = arith.constant 8 : i32
    %c0_i32_82 = arith.constant 0 : i32
    %126 = arith.cmpi eq, %arg1, %c0_i32_82 : i32
    %127 = arith.extui %126 : i1 to i32
    %c0_i32_83 = arith.constant 0 : i32
    %128 = arith.cmpi ne, %127, %c0_i32_83 : i32
    scf.if %128 {
      %c0_84 = arith.constant 0 : index
      %c0_85 = arith.constant 0 : index
      %129 = vector.load %arg6[%c0_84, %c0_85] : memref<2x128xf32, #tpu.memory_space<vmem>>, vector<2x128xf32>
      %c0_86 = arith.constant 0 : index
      %c0_87 = arith.constant 0 : index
      %130 = vector.load %arg4[%c0_86, %c0_87] : memref<2x128xf32, #tpu.memory_space<vmem>>, vector<2x128xf32>
      %131 = arith.mulf %129, %130 : vector<2x128xf32>
      %132 = vector.shape_cast %131 : vector<2x128xf32> to vector<1x2x128xf32>
      %cst_88 = arith.constant dense<0.000000e+00> : vector<1xf32>
      %133 = vector.multi_reduction <add>, %132, %cst_88 [1, 2] : vector<1x2x128xf32> to vector<1xf32>
      %134 = vector.shape_cast %133 : vector<1xf32> to vector<1x1x1xf32>
      %135 = vector.extract %134[0, 0, 0] : f32 from vector<1x1x1xf32>
      %136 = vector.broadcast %135 : f32 to vector<1x8x128xf32>
      %c0_89 = arith.constant 0 : index
      %c0_90 = arith.constant 0 : index
      %c0_91 = arith.constant 0 : index
      %137 = vector.load %arg5[%c0_89, %c0_90, %c0_91] : memref<1x8x128xf32, #tpu.memory_space<vmem>>, vector<1x8x128xf32>
      tpu.vector_store %arg5[%c0_89, %c0_90, %c0_91], %136 {strides = array<i32>} : memref<1x8x128xf32, #tpu.memory_space<vmem>>, vector<1x8x128xf32>,
    } else {
    }
    return
  }
  func.func @transform_0(%arg0: i32, %arg1: i32) -> (i32, i32, i32) {
    %c1_i32 = arith.constant 1 : i32
    %0 = arith.muli %arg0, %c1_i32 : i32
    %1 = arith.addi %0, %arg1 : i32
    %c0_i32 = arith.constant 0 : i32
    %2 = arith.minsi %1, %c0_i32 : i32
    %c0_i32_0 = arith.constant 0 : i32
    %c0_i32_1 = arith.constant 0 : i32
    %c0_i32_2 = arith.constant 0 : i32
    return %2, %c0_i32_0, %c0_i32_1 : i32, i32, i32
  }
  func.func @transform_1(%arg0: i32, %arg1: i32) -> (i32, i32, i32) {
    %c1_i32 = arith.constant 1 : i32
    %0 = arith.muli %arg0, %c1_i32 : i32
    %1 = arith.addi %0, %arg1 : i32
    %c0_i32 = arith.constant 0 : i32
    %2 = arith.minsi %1, %c0_i32 : i32
    %c0_i32_0 = arith.constant 0 : i32
    %c0_i32_1 = arith.constant 0 : i32
    %c0_i32_2 = arith.constant 0 : i32
    return %2, %c0_i32_0, %c0_i32_1 : i32, i32, i32
  }
  func.func @transform_2(%arg0: i32, %arg1: i32) -> (i32, i32) {
    %c0_i32 = arith.constant 0 : i32
    %c0_i32_0 = arith.constant 0 : i32
    %c0_i32_1 = arith.constant 0 : i32
    return %c0_i32, %c0_i32_0 : i32, i32
  }
  func.func @transform_3(%arg0: i32, %arg1: i32) -> (i32, i32, i32) {
    %c0_i32 = arith.constant 0 : i32
    %c0_i32_0 = arith.constant 0 : i32
    %c0_i32_1 = arith.constant 0 : i32
    return %arg0, %c0_i32, %c0_i32_0 : i32, i32, i32
  }
}

</mosaic_0001>

<llo_original>
// kernel: tpu_custom_call.1
$region0: #{tpu_custom_call.1}
  #allocation0 [shape = 'u32[]', space=smem, size = 0x4, offset = 0x4, fixed_abs, tag = 'smem constant byte address 0x4 - core index']
  #allocation1 [shape = 'u32[144,128]{1,0:T(1,128)}', space=vmem, size = 0x12000, scoped, tag = 'internal scratch']
  #allocation2 [shape = 'f32[2,128]{1,0:T(2,128)}', space=vmem, size = 0x400, scoped, tag = 'scratch operand']
  %s0 = inlined_call_operand.hbm [shape: f32[8,2,128], index: 0, kind: input, shape index: {}]
  %s1 = inlined_call_operand.hbm [shape: f32[8,2,128], index: 1, kind: input, shape index: {}]
  %s2 = inlined_call_operand.vmem [shape: f32[2,128], index: 2, kind: input, shape index: {}]
  %s3 = inlined_call_operand.hbm [shape: f32[1,8,128], index: 3, kind: output, shape index: {}]
  %s4 = sld [smem:[#allocation0]]
  $region38: #{tpu_custom_call.1} parent=0
    _
  %s6 = ssub.s32 1, %s4
  %s7 = scalar_select 0, %s6, %s4
  $region1: #{tpu_custom_call.1} parent=0
    #allocation3 [shape = 'u8[8192]{0}', space=vmem, size = 0x2000, scoped, tag = 'input window, operand 0, single buffered']
    #allocation4 [shape = 's32[1]{0}', space=sflag, size = 0x4, scoped, tag = 'scoped memory for tpu_custom_call.1']
    #allocation5 [shape = 's32[1]{0}', space=sflag, size = 0x4, scoped, tag = 'scoped memory for tpu_custom_call.1']
    #allocation6 [shape = 'u8[8192]{0}', space=vmem, size = 0x2000, scoped, tag = 'input window, operand 1, single buffered']
    #allocation7 [shape = 's32[1]{0}', space=sflag, size = 0x4, scoped, tag = 'scoped memory for tpu_custom_call.1']
    #allocation8 [shape = 'u8[4096]{0}', space=vmem, size = 0x1000, scoped, tag = 'output window, operand 0, single buffered']
    %8 = vsyncpa [#allocation4], 0
    %9 = vsyncpa [#allocation7], 0
    %10 = vsyncpa [#allocation5], 0
    // Predicated region
    $region2: #{tpu_custom_call.1} parent=1 // pred_check
      _
    $region3: #{tpu_custom_call.1} parent=1 // pred_check_branch
      %12 = sbr.rel (0) target = $region5
    $region4: #{tpu_custom_call.1} parent=1 // pred_region
      %s13 = sadd.s32 0, 0
      %p14 = scmp.lt.s32.totalorder %s13, 0
      %s15 = scalar_select %p14, %s13, 0
      %s16 = smul.u32 8, %s15
      %s18 = ssub.s32 256, 256
      %19 = vsyncadd [#allocation4], %s18
      %s20 = smul.addr %s16, 32
      %s21 = scalar_lea.hbm %s0, %s20
      %s22 = sshll.u32 [#allocation3], 4
      %s23 = int_to_ptr.vmem [resolvable:$true] %s22
      %28 = dma.hbm_to_vmem [thread:$0]  %s21, 256, %s23, [#allocation4], 32, 32, 2
    $region5: #{tpu_custom_call.1} parent=1 // pred_fallthru
      _
    // Predicated region
    $region6: #{tpu_custom_call.1} parent=1 // pred_check
      _
    $region7: #{tpu_custom_call.1} parent=1 // pred_check_branch
      %30 = sbr.rel (0) target = $region9
    $region8: #{tpu_custom_call.1} parent=1 // pred_region
      %s31 = sadd.s32 0, 0
      %p32 = scmp.lt.s32.totalorder %s31, 0
      %s33 = scalar_select %p32, %s31, 0
      %s34 = smul.u32 8, %s33
      %s36 = ssub.s32 256, 256
      %37 = vsyncadd [#allocation7], %s36
      %s38 = smul.addr %s34, 32
      %s39 = scalar_lea.hbm %s1, %s38
      %s40 = sshll.u32 [#allocation6], 4
      %s41 = int_to_ptr.vmem [resolvable:$true] %s40
      %46 = dma.hbm_to_vmem [thread:$0]  %s39, 256, %s41, [#allocation7], 32, 32, 2
    $region9: #{tpu_custom_call.1} parent=1 // pred_fallthru
      _
    // Predicated region
    $region10: #{tpu_custom_call.1} parent=1 // pred_check
      _
    $region11: #{tpu_custom_call.1} parent=1 // pred_check_branch
      %48 = sbr.rel (0) target = $region13
    $region12: #{tpu_custom_call.1} parent=1 // pred_region
      _
    $region13: #{tpu_custom_call.1} parent=1 // pred_fallthru
      _
    // Predicated region
    $region14: #{tpu_custom_call.1} parent=1 // pred_check
      _
    $region15: #{tpu_custom_call.1} parent=1 // pred_check_branch
      %50 = sbr.rel (0) target = $region17
    $region16: #{tpu_custom_call.1} parent=1 // pred_region
      %51 = dma.done [#allocation4], 256
    $region17: #{tpu_custom_call.1} parent=1 // pred_fallthru
      _
    // Predicated region
    $region18: #{tpu_custom_call.1} parent=1 // pred_check
      _
    $region19: #{tpu_custom_call.1} parent=1 // pred_check_branch
      %53 = sbr.rel (0) target = $region21
    $region20: #{tpu_custom_call.1} parent=1 // pred_region
      %54 = dma.done [#allocation7], 256
    $region21: #{tpu_custom_call.1} parent=1 // pred_fallthru
      _
    %s55 = sadd.s32 0, 0
    %p56 = scmp.lt.s32.totalorder %s55, 0
    %s57 = scalar_select %p56, %s55, 0
    %s58 = smul.u32 8, %s57
    %s59 = sadd.s32 0, 0
    %p60 = scmp.lt.s32.totalorder %s59, 0
    %s61 = scalar_select %p60, %s59, 0
    %s62 = smul.u32 8, %s61
    %p63 = scmp.eq.s32.totalorder 0, 0
    // Predicated region
    $region22: #{tpu_custom_call.1} parent=1 // pred_check
      %p64 = pneg %p63
    $region23: #{tpu_custom_call.1} parent=1 // pred_check_branch
      %66 = sbr.rel (%p64) target = $region25
    $region24: #{tpu_custom_call.1} parent=1 // pred_region
      %67 = vst [vmem:[#allocation2] sm:$0x3] 0.0
    $region25: #{tpu_custom_call.1} parent=1 // pred_fallthru
      _
    %s68 = sadd.s32 0, 0
    %s69 = smul.u32 %s68, 8
    %v70 = vld [vmem:[#allocation3] sm:$0x3]
    %v71 = vld [vmem:[#allocation6] sm:$0x3]
    %v72 = vsub.f32 %v70, %v71
    %v73 = vld [vmem:[#allocation2] sm:$0x3]
    %p74 = scmp.lt.s32.totalorder %s69, 8
    %v75 = vmul.f32 %v72, %v72
    %s76 = scalar_select %p74, 1, 0
    %v77 = vstv %s76
    %vm78 = vcmp.eq.s32.totalorder %v77, 1
    %v79 = vsel %vm78, %v75, 0.0
    %v80 = vadd.f32 %v73, %v79
    %81 = vst [vmem:[#allocation2] sm:$0x3] %v80
    %s82 = scalar_lea.vmem [#allocation3], 2
    %v83 = vld [vmem:[%s82] sm:$0x3]
    %s84 = scalar_lea.vmem [#allocation6], 2
    %v85 = vld [vmem:[%s84] sm:$0x3]
    %v86 = vsub.f32 %v83, %v85
    %v87 = vld [vmem:[#allocation2] sm:$0x3]
    %s88 = sadd.s32 %s69, 1
    %p89 = scmp.lt.s32.totalorder %s88, 8
    %v90 = vmul.f32 %v86, %v86
    %s91 = scalar_select %p89, 1, 0
    %v92 = vstv %s91
    %vm93 = vcmp.eq.s32.totalorder %v92, 1
    %v94 = vsel %vm93, %v90, 0.0
    %v95 = vadd.f32 %v87, %v94
    %96 = vst [vmem:[#allocation2] sm:$0x3] %v95
    %s97 = scalar_lea.vmem [#allocation3], 4
    %v98 = vld [vmem:[%s97] sm:$0x3]
    %s99 = scalar_lea.vmem [#allocation6], 4
    %v100 = vld [vmem:[%s99] sm:$0x3]
    %v101 = vsub.f32 %v98, %v100
    %v102 = vld [vmem:[#allocation2] sm:$0x3]
    %s103 = sadd.s32 %s69, 2
    %p104 = scmp.lt.s32.totalorder %s103, 8
    %v105 = vmul.f32 %v101, %v101
    %s106 = scalar_select %p104, 1, 0
    %v107 = vstv %s106
    %vm108 = vcmp.eq.s32.totalorder %v107, 1
    %v109 = vsel %vm108, %v105, 0.0
    %v110 = vadd.f32 %v102, %v109
    %111 = vst [vmem:[#allocation2] sm:$0x3] %v110
    %s112 = scalar_lea.vmem [#allocation3], 6
    %v113 = vld [vmem:[%s112] sm:$0x3]
    %s114 = scalar_lea.vmem [#allocation6], 6
    %v115 = vld [vmem:[%s114] sm:$0x3]
    %v116 = vsub.f32 %v113, %v115
    %v117 = vld [vmem:[#allocation2] sm:$0x3]
    %s118 = sadd.s32 %s69, 3
    %p119 = scmp.lt.s32.totalorder %s118, 8
    %v120 = vmul.f32 %v116, %v116
    %s121 = scalar_select %p119, 1, 0
    %v122 = vstv %s121
    %vm123 = vcmp.eq.s32.totalorder %v122, 1
    %v124 = vsel %vm123, %v120, 0.0
    %v125 = vadd.f32 %v117, %v124
    %126 = vst [vmem:[#allocation2] sm:$0x3] %v125
    %s127 = scalar_lea.vmem [#allocation3], 8
    %v128 = vld [vmem:[%s127] sm:$0x3]
    %s129 = scalar_lea.vmem [#allocation6], 8
    %v130 = vld [vmem:[%s129] sm:$0x3]
    %v131 = vsub.f32 %v128, %v130
    %v132 = vld [vmem:[#allocation2] sm:$0x3]
    %s133 = sadd.s32 %s69, 4
    %p134 = scmp.lt.s32.totalorder %s133, 8
    %v135 = vmul.f32 %v131, %v131
    %s136 = scalar_select %p134, 1, 0
    %v137 = vstv %s136
    %vm138 = vcmp.eq.s32.totalorder %v137, 1
    %v139 = vsel %vm138, %v135, 0.0
    %v140 = vadd.f32 %v132, %v139
    %141 = vst [vmem:[#allocation2] sm:$0x3] %v140
    %s142 = scalar_lea.vmem [#allocation3], 10
    %v143 = vld [vmem:[%s142] sm:$0x3]
    %s144 = scalar_lea.vmem [#allocation6], 10
    %v145 = vld [vmem:[%s144] sm:$0x3]
    %v146 = vsub.f32 %v143, %v145
    %v147 = vld [vmem:[#allocation2] sm:$0x3]
    %s148 = sadd.s32 %s69, 5
    %p149 = scmp.lt.s32.totalorder %s148, 8
    %v150 = vmul.f32 %v146, %v146
    %s151 = scalar_select %p149, 1, 0
    %v152 = vstv %s151
    %vm153 = vcmp.eq.s32.totalorder %v152, 1
    %v154 = vsel %vm153, %v150, 0.0
    %v155 = vadd.f32 %v147, %v154
    %156 = vst [vmem:[#allocation2] sm:$0x3] %v155
    %s157 = scalar_lea.vmem [#allocation3], 12
    %v158 = vld [vmem:[%s157] sm:$0x3]
    %s159 = scalar_lea.vmem [#allocation6], 12
    %v160 = vld [vmem:[%s159] sm:$0x3]
    %v161 = vsub.f32 %v158, %v160
    %v162 = vld [vmem:[#allocation2] sm:$0x3]
    %s163 = sadd.s32 %s69, 6
    %p164 = scmp.lt.s32.totalorder %s163, 8
    %v165 = vmul.f32 %v161, %v161
    %s166 = scalar_select %p164, 1, 0
    %v167 = vstv %s166
    %vm168 = vcmp.eq.s32.totalorder %v167, 1
    %v169 = vsel %vm168, %v165, 0.0
    %v170 = vadd.f32 %v162, %v169
    %171 = vst [vmem:[#allocation2] sm:$0x3] %v170
    %s172 = scalar_lea.vmem [#allocation3], 14
    %v173 = vld [vmem:[%s172] sm:$0x3]
    %s174 = scalar_lea.vmem [#allocation6], 14
    %v175 = vld [vmem:[%s174] sm:$0x3]
    %v176 = vsub.f32 %v173, %v175
    %v177 = vld [vmem:[#allocation2] sm:$0x3]
    %s178 = sadd.s32 %s69, 7
    %p179 = scmp.lt.s32.totalorder %s178, 8
    %v180 = vmul.f32 %v176, %v176
    %s181 = scalar_select %p179, 1, 0
    %v182 = vstv %s181
    %vm183 = vcmp.eq.s32.totalorder %v182, 1
    %v184 = vsel %vm183, %v180, 0.0
    %v185 = vadd.f32 %v177, %v184
    %186 = vst [vmem:[#allocation2] sm:$0x3] %v185
    // Predicated region
    $region26: #{tpu_custom_call.1} parent=1 // pred_check
      %p187 = pneg %p63
    $region27: #{tpu_custom_call.1} parent=1 // pred_check_branch
      %189 = sbr.rel (%p187) target = $region29
    $region28: #{tpu_custom_call.1} parent=1 // pred_region
      %v190 = vld [vmem:[#allocation2] sm:$0x3]
      %v191 = vld [vmem:[%s2] sm:$0x3]
      %v192 = vmul.f32 %v190, %v191
      %vm193 = vcmask 1041408
      %v194 = vsel %vm193, %v192, 0.0
      %195 = vadd.xlane.f32.xlu0 %v194
      %v196 = vpop.xlane.xlu0 %195
      %v197 = vrot.slane %v196, 4
      %v198 = vadd.f32 %v196, %v197
      %v199 = vrot.slane %v198, 2
      %v200 = vadd.f32 %v198, %v199
      %v201 = vrot.slane %v200, 1
      %v202 = vadd.f32 %v200, %v201
      %s203 = vtos %v202
      %v204 = vstv %s203
      %205 = vst [vmem:[#allocation8] sm:$0xff] %v204
    $region29: #{tpu_custom_call.1} parent=1 // pred_fallthru
      _
    // Predicated region
    $region30: #{tpu_custom_call.1} parent=1 // pred_check
      _
    $region31: #{tpu_custom_call.1} parent=1 // pred_check_branch
      %207 = sbr.rel (0) target = $region33
    $region32: #{tpu_custom_call.1} parent=1 // pred_region
      %s209 = ssub.s32 128, 128
      %210 = vsyncadd [#allocation5], %s209
      %s212 = sshll.u32 [#allocation8], 4
      %s213 = int_to_ptr.vmem [resolvable:$true] %s212
      %215 = dma.vmem_to_hbm [thread:$0]  %s213, 128, %s3, [#allocation5]
    $region33: #{tpu_custom_call.1} parent=1 // pred_fallthru
      _
    // Predicated region
    $region34: #{tpu_custom_call.1} parent=1 // pred_check
      _
    $region35: #{tpu_custom_call.1} parent=1 // pred_check_branch
      %217 = sbr.rel (0) target = $region37
    $region36: #{tpu_custom_call.1} parent=1 // pred_region
      %218 = dma.done [#allocation5], 128
    $region37: #{tpu_custom_call.1} parent=1 // pred_fallthru
      _
    %219 = vsyncpa [#allocation4], 1
    %220 = vsyncpa [#allocation7], 1
    %221 = vsyncpa [#allocation5], 1

</llo_original>
